<compile_context>
chip_gen: v6e
topology: v6e:2x2x1
jax: 0.10.0
libtpu: 0.0.40
codegen_flags: <defaults>
</compile_context>

<pallas_src>
import math

import jax
import jax.numpy as jnp
from jax.experimental import pallas as pl
from jax.experimental.pallas import tpu as pltpu

_MIN_PALLAS_ELEMS = 8192          # below this a pallas_call launch is pure overhead
_BUDGET_CACHE = None


# ------------------------------ small helpers --------------------------------

def _round_down(x, m):
    return (x // m) * m


def _round_up(x, m):
    return ((x + m - 1) // m) * m


def _tpu_vmem_bytes():
    try:
        return int(pltpu.get_tpu_info().vmem_capacity_bytes)
    except Exception:
        return 64 * 1024 * 1024   # conservative (v7x per-TC VMEM)


def _budget():
    """(per-input block target bytes, scoped vmem limit) per TPU generation."""
    global _BUDGET_CACHE
    if _BUDGET_CACHE is None:
        cap = _tpu_vmem_bytes()
        if cap >= 96 * 1024 * 1024:                     # v5e / v6e: 128 MiB VMEM
            _BUDGET_CACHE = (6 * 1024 * 1024, 64 * 1024 * 1024)
        else:                                           # v7x: 64 MiB per TC
            _BUDGET_CACHE = (3 * 1024 * 1024, 40 * 1024 * 1024)
    return _BUDGET_CACHE


def _flatten_lane_dense(x, pad_value):
    """Free collapsing reshape to (rows, lane) with lane a multiple of 128.

    Only pads (one HBM copy) in the rare case where the element count is not a
    multiple of 128; the pad value is neutral for the downstream reduction
    (0 for squared-diff, 1 for log).
    """
    flat = x.reshape(-1)
    t = flat.shape[0]
    lane = next((l for l in (512, 256, 128) if t % l == 0), None)
    if lane is None:
        lane = 128
        pad = _round_up(t, lane) - t
        flat = jnp.concatenate(
            [flat, jnp.full((pad,), pad_value, dtype=flat.dtype)])
    return flat.reshape(-1, lane)


def _plan(rows, lane, itemsize, target_bytes):
    """Row-tile / grid plan for a (rows, lane) streaming reduction."""
    if rows < 8:
        row_tile = rows                          # block == full array along rows
    else:
        sub = {4: 8, 2: 16, 1: 32}.get(itemsize, 8)
        want = _round_down(max(target_bytes // (lane * itemsize), sub), sub)
        row_tile = max(8, min(want, _round_down(rows, 8)))
    n_blocks = pl.cdiv(rows, row_tile)
    num_splits = 2 if n_blocks >= 2 else 1       # v7x megacore; no-op elsewhere
    n_per_split = pl.cdiv(n_blocks, num_splits)
    needs_clamp = num_splits * n_per_split != n_blocks
    needs_mask = needs_clamp or (rows % row_tile != 0)
    return row_tile, n_blocks, num_splits, n_per_split, needs_clamp, needs_mask


def _in_index_map(n_per_split, n_blocks, needs_clamp):
    if needs_clamp:
        return lambda c, i: (jnp.minimum(c * n_per_split + i, n_blocks - 1), 0)
    return lambda c, i: (c * n_per_split + i, 0)


# ----------------------------- Pallas kernels --------------------------------

def _make_sq_diff_kernel(rows, row_tile, lane, n_per_split, needs_mask):
    def kernel(a_ref, b_ref, o_ref, acc_ref):
        c, i = pl.program_id(0), pl.program_id(1)

        @pl.when(i == 0)
        def _():
            acc_ref[...] = jnp.zeros_like(acc_ref)

        d = a_ref[...].astype(jnp.float32) - b_ref[...].astype(jnp.float32)
        if needs_mask:
            row0 = (c * n_per_split + i) * row_tile
            rid = jax.lax.broadcasted_iota(jnp.int32, (row_tile, lane), 0) + row0
            d = jnp.where(rid < rows, d, 0.0)
        sq = d * d
        if row_tile < 8:
            acc_ref[...] += sq
        else:  # fold into a vreg-sized accumulator: pure vreg adds, no XLU
            acc_ref[...] += sq.reshape(row_tile // 8, 8, lane).sum(axis=0)

        @pl.when(i == n_per_split - 1)
        def _():
            o_ref[0, 0] = jnp.sum(acc_ref[...])

    return kernel


def _make_log_sum_kernel(rows, row_tile, lane, n_per_split, needs_mask):
    def kernel(x_ref, o_ref, acc_ref):
        c, i = pl.program_id(0), pl.program_id(1)

        @pl.when(i == 0)
        def _():
            acc_ref[...] = jnp.zeros_like(acc_ref)

        x = x_ref[...].astype(jnp.float32)
        if needs_mask:
            row0 = (c * n_per_split + i) * row_tile
            rid = jax.lax.broadcasted_iota(jnp.int32, (row_tile, lane), 0) + row0
            x = jnp.where(rid < rows, x, 1.0)    # log(1) == 0
        lg = jnp.log(x)
        if row_tile < 8:
            acc_ref[...] += lg
        else:
            acc_ref[...] += lg.reshape(row_tile // 8, 8, lane).sum(axis=0)

        @pl.when(i == n_per_split - 1)
        def _():
            o_ref[0, 0] = jnp.sum(acc_ref[...])

    return kernel


# ------------------------------ JAX wrappers ----------------------------------

def _launch_reduction(kernel, inputs, lane, row_tile, n_blocks,
                      num_splits, n_per_split, needs_clamp, vmem_limit):
    acc_rows = row_tile if row_tile < 8 else 8
    in_map = _in_index_map(n_per_split, n_blocks, needs_clamp)
    out = pl.pallas_call(
        kernel,
        out_shape=jax.ShapeDtypeStruct((num_splits, 1), jnp.float32),
        grid_spec=pltpu.PrefetchScalarGridSpec(
            num_scalar_prefetch=0,
            grid=(num_splits, n_per_split),
            in_specs=[pl.BlockSpec((row_tile, lane), in_map) for _ in inputs],
            out_specs=pl.BlockSpec((1, 1), lambda c, i: (c, 0),
                                   memory_space=pltpu.SMEM),
            scratch_shapes=[pltpu.VMEM((acc_rows, lane), jnp.float32)],
        ),
        compiler_params=pltpu.CompilerParams(
            dimension_semantics=("parallel", "arbitrary"),
            vmem_limit_bytes=vmem_limit),
    )(*inputs)
    return jnp.sum(out)


def _pallas_sq_diff_sum(a, b, *, target_bytes=None):
    """sum((a - b)^2) over all elements."""
    a2 = _flatten_lane_dense(a, pad_value=0)
    b2 = _flatten_lane_dense(b, pad_value=0)
    rows, lane = a2.shape
    tgt, vmem_limit = _budget()
    if target_bytes is not None:
        tgt = target_bytes
    itemsize = max(a2.dtype.itemsize, b2.dtype.itemsize)
    row_tile, n_blocks, num_splits, n_per_split, needs_clamp, needs_mask = _plan(
        rows, lane, itemsize, tgt)
    kernel = _make_sq_diff_kernel(rows, row_tile, lane, n_per_split, needs_mask)
    return _launch_reduction(kernel, (a2, b2), lane, row_tile, n_blocks,
                             num_splits, n_per_split, needs_clamp, vmem_limit)


def _pallas_log_sum(x, *, target_bytes=None):
    """sum(log(x)) over all elements."""
    x2 = _flatten_lane_dense(x, pad_value=1)
    rows, lane = x2.shape
    tgt, vmem_limit = _budget()
    if target_bytes is not None:
        tgt = target_bytes
    row_tile, n_blocks, num_splits, n_per_split, needs_clamp, needs_mask = _plan(
        rows, lane, x2.dtype.itemsize, tgt)
    kernel = _make_log_sum_kernel(rows, row_tile, lane, n_per_split, needs_mask)
    return _launch_reduction(kernel, (x2,), lane, row_tile, n_blocks,
                             num_splits, n_per_split, needs_clamp, vmem_limit)


class RateDistortionLoss:
    """JAX/Pallas port of the PyTorch RateDistortionLoss forward pass."""

    def __init__(self, lmbda=0.05):
        self.lmbda = lmbda

    def __call__(self, output, target, lmbda=None):
        N, _, H, W = target.shape                 # NCHW, as in PyTorch
        num_pixels = N * H * W
        if lmbda is None:
            lmbda = self.lmbda

        # bpp_loss = sum_k [ sum(log(likelihoods_k)) / (-log(2) * num_pixels) ]
        # Tiny likelihood tensors stay in XLA (launch overhead dominates);
        # larger ones use the Pallas streaming reduction.
        bpp_loss = jnp.float32(0.0)
        for lk in output['likelihoods'].values():
            if lk.size >= _MIN_PALLAS_ELEMS:
                s = _pallas_log_sum(lk)
            else:
                s = jnp.sum(jnp.log(lk.astype(jnp.float32)))
            bpp_loss = bpp_loss + s / (-math.log(2) * num_pixels)

        # mse_loss = mean((x_hat - target)^2) over all N*C*H*W elements
        mse_loss = _pallas_sq_diff_sum(output['x_hat'], target) / float(target.size)

        loss = lmbda * (255.0 ** 2) * mse_loss + bpp_loss
        return {'bpp_loss': bpp_loss, 'mse_loss': mse_loss, 'loss': loss}


# ---------------------------------- main --------------------------------------

if __name__ == "__main__":
    key = jax.random.PRNGKey(0)
    k1, k2, k3, k4, k5, k6 = jax.random.split(key, 6)

    # Small, module-consistent shapes.
    N, C, H, W = 2, 3, 16, 16
    target = jax.random.uniform(k1, (N, C, H, W), dtype=jnp.float32)
    x_hat = target + 0.05 * jax.random.normal(k2, (N, C, H, W), dtype=jnp.float32)

    # Likelihoods in (0, 1]: one large enough for the Pallas path, one tiny
    # (handled by XLA per the launch-overhead rule).
    lik_y = jax.random.uniform(k3, (N, 32, H, W), dtype=jnp.float32,
                               minval=0.05, maxval=1.0)            # 16384 elems
    lik_z = jax.random.uniform(k4, (N, 4, H // 4, W // 4), dtype=jnp.float32,
                               minval=0.05, maxval=1.0)            # 128 elems

    output = {'x_hat': x_hat, 'likelihoods': {'y': lik_y, 'z': lik_z}}

    criterion = RateDistortionLoss(lmbda=0.05)
    out = criterion(output, target)
    out = jax.tree_util.tree_map(jax.block_until_ready, out)

    # Pure-JAX reference check of the full loss.
    num_pixels = N * H * W
    ref_bpp = sum(jnp.sum(jnp.log(l)) / (-math.log(2) * num_pixels)
                  for l in (lik_y, lik_z))
    ref_mse = jnp.mean((x_hat - target) ** 2)
    ref_loss = 0.05 * 255.0 ** 2 * ref_mse + ref_bpp
    assert jnp.allclose(out['bpp_loss'], ref_bpp, rtol=1e-5, atol=1e-5)
    assert jnp.allclose(out['mse_loss'], ref_mse, rtol=1e-5, atol=1e-6)
    assert jnp.allclose(out['loss'], ref_loss, rtol=1e-5, atol=1e-4)

    # Stress the multi-block / 2-way-split / clamped-ghost-block / masked-tail
    # paths with a deliberately tiny block target.
    n_elem = 140 * 512                         # rows=140 -> partial tail block
    a = jax.random.uniform(k5, (n_elem,), dtype=jnp.float32)
    b = jax.random.uniform(k6, (n_elem,), dtype=jnp.float32)
    got = _pallas_sq_diff_sum(a, b, target_bytes=64 * 1024)
    ref = jnp.sum((a - b) ** 2)
    assert jnp.allclose(got, ref, rtol=1e-4, atol=1e-3), (got, ref)

    # Pad-fallback path (element count not a multiple of 128).
    p = jax.random.uniform(k5, (999,), dtype=jnp.float32, minval=0.05, maxval=1.0)
    got = _pallas_log_sum(p, target_bytes=64 * 1024)
    ref = jnp.sum(jnp.log(p))
    assert jnp.allclose(got, ref, rtol=1e-4, atol=1e-3), (got, ref)

    jax.block_until_ready(got)
    print("KERNEL_OK")
</pallas_src>

<mosaic_0001>
module attributes {stable_mosaic.version = 11 : i64} {
  func.func @kernel(%arg0: i32, %arg1: i32, %arg2: memref<32x512xf32, #tpu.memory_space<vmem>>, %arg3: memref<1x1xf32, #tpu.memory_space<smem>>, %arg4: memref<8x512xf32, #tpu.memory_space<vmem>>) attributes {dimension_semantics = [#tpu.dimension_semantics<parallel>, #tpu.dimension_semantics<arbitrary>], iteration_bounds = array<i64: 1, 1>, scalar_prefetch = 0 : i64, scratch_operands = 1 : i64, tpu.core_type = #tpu.core_type<tc>, window_params = [{transform_indices = @transform_0, window_bounds = array<i64: 32, 512>}, {transform_indices = @transform_1, window_bounds = array<i64: 1, 1>}]} {
    %c0_i32 = arith.constant 0 : i32
    %0 = arith.cmpi eq, %arg1, %c0_i32 : i32
    %1 = arith.extui %0 : i1 to i32
    %c0_i32_0 = arith.constant 0 : i32
    %2 = arith.cmpi ne, %1, %c0_i32_0 : i32
    scf.if %2 {
      %cst_8 = arith.constant 0.000000e+00 : f32
      %13 = vector.broadcast %cst_8 : f32 to vector<8x512xf32>
      %c0_9 = arith.constant 0 : index
      %c0_10 = arith.constant 0 : index
      %14 = vector.load %arg4[%c0_9, %c0_10] : memref<8x512xf32, #tpu.memory_space<vmem>>, vector<8x512xf32>
      tpu.vector_store %arg4[%c0_9, %c0_10], %13 {strides = array<i32>} : memref<8x512xf32, #tpu.memory_space<vmem>>, vector<8x512xf32>,
    } else {
    }
    %c0 = arith.constant 0 : index
    %c0_1 = arith.constant 0 : index
    %3 = vector.load %arg2[%c0, %c0_1] : memref<32x512xf32, #tpu.memory_space<vmem>>, vector<32x512xf32>
    %4 = math.log %3 : vector<32x512xf32>
    %c0_2 = arith.constant 0 : index
    %c0_3 = arith.constant 0 : index
    %5 = vector.load %arg4[%c0_2, %c0_3] : memref<8x512xf32, #tpu.memory_space<vmem>>, vector<8x512xf32>
    %6 = vector.shape_cast %4 : vector<32x512xf32> to vector<4x8x512xf32>
    %cst = arith.constant dense<0.000000e+00> : vector<8x512xf32>
    %7 = vector.multi_reduction <add>, %6, %cst [0] : vector<4x8x512xf32> to vector<8x512xf32>
    %8 = arith.addf %5, %7 : vector<8x512xf32>
    %c0_4 = arith.constant 0 : index
    %c0_5 = arith.constant 0 : index
    %9 = vector.load %arg4[%c0_4, %c0_5] : memref<8x512xf32, #tpu.memory_space<vmem>>, vector<8x512xf32>
    tpu.vector_store %arg4[%c0_4, %c0_5], %8 {strides = array<i32>} : memref<8x512xf32, #tpu.memory_space<vmem>>, vector<8x512xf32>,
    %c0_i32_6 = arith.constant 0 : i32
    %10 = arith.cmpi eq, %arg1, %c0_i32_6 : i32
    %11 = arith.extui %10 : i1 to i32
    %c0_i32_7 = arith.constant 0 : i32
    %12 = arith.cmpi ne, %11, %c0_i32_7 : i32
    scf.if %12 {
      %c0_8 = arith.constant 0 : index
      %c0_9 = arith.constant 0 : index
      %13 = vector.load %arg4[%c0_8, %c0_9] : memref<8x512xf32, #tpu.memory_space<vmem>>, vector<8x512xf32>
      %14 = vector.shape_cast %13 : vector<8x512xf32> to vector<1x8x512xf32>
      %cst_10 = arith.constant dense<0.000000e+00> : vector<1xf32>
      %15 = vector.multi_reduction <add>, %14, %cst_10 [1, 2] : vector<1x8x512xf32> to vector<1xf32>
      %16 = vector.shape_cast %15 : vector<1xf32> to vector<1x1x1xf32>
      %17 = vector.extract %16[0, 0, 0] : f32 from vector<1x1x1xf32>
      %c0_11 = arith.constant 0 : index
      %c0_12 = arith.constant 0 : index
      %18 = memref.load %arg3[%c0_11, %c0_12] : memref<1x1xf32, #tpu.memory_space<smem>>
      memref.store %17, %arg3[%c0_11, %c0_12] : memref<1x1xf32, #tpu.memory_space<smem>>
    } else {
    }
    return
  }
  func.func @transform_0(%arg0: i32, %arg1: i32) -> (i32, i32) {
    %c1_i32 = arith.constant 1 : i32
    %0 = arith.muli %arg0, %c1_i32 : i32
    %1 = arith.addi %0, %arg1 : i32
    %c0_i32 = arith.constant 0 : i32
    %c0_i32_0 = arith.constant 0 : i32
    return %1, %c0_i32 : i32, i32
  }
  func.func @transform_1(%arg0: i32, %arg1: i32) -> (i32, i32) {
    %c0_i32 = arith.constant 0 : i32
    %c0_i32_0 = arith.constant 0 : i32
    return %arg0, %c0_i32 : i32, i32
  }
}

</mosaic_0001>

<llo_original>
// kernel: tpu_custom_call.1
$region0: #{tpu_custom_call.1}
  #allocation0 [shape = 'u32[]', space=smem, size = 0x4, offset = 0x4, fixed_abs, tag = 'smem constant byte address 0x4 - core index']
  #allocation1 [shape = 'u32[144,128]{1,0:T(1,128)}', space=vmem, size = 0x12000, scoped, tag = 'internal scratch']
  #allocation2 [shape = 'f32[8,512]{1,0:T(8,128)}', space=vmem, size = 0x4000, scoped, tag = 'scratch operand']
  %s0 = inlined_call_operand.hbm [shape: f32[32,512], index: 0, kind: input, shape index: {}]
  %s1 = inlined_call_operand.hbm [shape: f32[1,1], index: 1, kind: output, shape index: {}]
  %s2 = sld [smem:[#allocation0]]
  $region26: #{tpu_custom_call.1} parent=0
    _
  %s4 = ssub.s32 1, %s2
  %s5 = scalar_select 0, %s4, %s2
  $region1: #{tpu_custom_call.1} parent=0
    #allocation3 [shape = 'u8[65536]{0}', space=vmem, size = 0x10000, scoped, tag = 'input window, operand 0, single buffered']
    #allocation4 [shape = 's32[1]{0}', space=sflag, size = 0x4, scoped, tag = 'scoped memory for tpu_custom_call.1']
    #allocation5 [shape = 's32[1]{0}', space=sflag, size = 0x4, scoped, tag = 'scoped memory for tpu_custom_call.1']
    #allocation6 [shape = 'u8[512]{0}', space=smem, size = 0x200, scoped, tag = 'output window, operand 0, single buffered']
    %6 = vsyncpa [#allocation4], 0
    %7 = vsyncpa [#allocation5], 0
    // Predicated region
    $region2: #{tpu_custom_call.1} parent=1 // pred_check
      _
    $region3: #{tpu_custom_call.1} parent=1 // pred_check_branch
      %9 = sbr.rel (0) target = $region5
    $region4: #{tpu_custom_call.1} parent=1 // pred_region
      %s10 = sadd.s32 0, 0
      %s11 = smul.u32 4, %s10
      %s13 = ssub.s32 2048, 2048
      %14 = vsyncadd [#allocation4], %s13
      %s15 = smul.addr %s11, 4
      %s16 = smul.addr %s15, 128
      %s17 = scalar_lea.hbm %s0, %s16
      %s18 = sshll.u32 [#allocation3], 4
      %s19 = int_to_ptr.vmem [resolvable:$true] %s18
      %24 = dma.hbm_to_vmem [thread:$0]  %s17, 2048, %s19, [#allocation4], 512, 512, 32
    $region5: #{tpu_custom_call.1} parent=1 // pred_fallthru
      _
    // Predicated region
    $region6: #{tpu_custom_call.1} parent=1 // pred_check
      _
    $region7: #{tpu_custom_call.1} parent=1 // pred_check_branch
      %26 = sbr.rel (0) target = $region9
    $region8: #{tpu_custom_call.1} parent=1 // pred_region
      %27 = dma.done [#allocation4], 2048
    $region9: #{tpu_custom_call.1} parent=1 // pred_fallthru
      _
    %s28 = sadd.s32 0, 0
    %s29 = smul.u32 4, %s28
    %p30 = scmp.eq.s32.totalorder 0, 0
    // Predicated region
    $region10: #{tpu_custom_call.1} parent=1 // pred_check
      %p31 = pneg %p30
    $region11: #{tpu_custom_call.1} parent=1 // pred_check_branch
      %33 = sbr.rel (%p31) target = $region13
    $region12: #{tpu_custom_call.1} parent=1 // pred_region
      %34 = vst [vmem:[#allocation2] sm:$0xff] 0.0
      %35 = vst [vmem:[#allocation2 + $0x8] sm:$0xff] 0.0
      %36 = vst [vmem:[#allocation2 + $0x10] sm:$0xff] 0.0
      %37 = vst [vmem:[#allocation2 + $0x18] sm:$0xff] 0.0
    $region13: #{tpu_custom_call.1} parent=1 // pred_fallthru
      _
    %v38 = vld [vmem:[#allocation3] sm:$0xff]
    %v39 = vld [vmem:[#allocation3 + $0x8] sm:$0xff]
    %v40 = vld [vmem:[#allocation3 + $0x10] sm:$0xff]
    %v41 = vld [vmem:[#allocation3 + $0x18] sm:$0xff]
    %v42 = vld [vmem:[#allocation3 + $0x20] sm:$0xff]
    %v43 = vld [vmem:[#allocation3 + $0x28] sm:$0xff]
    %v44 = vld [vmem:[#allocation3 + $0x30] sm:$0xff]
    %v45 = vld [vmem:[#allocation3 + $0x38] sm:$0xff]
    %v46 = vld [vmem:[#allocation3 + $0x40] sm:$0xff]
    %v47 = vld [vmem:[#allocation3 + $0x48] sm:$0xff]
    %v48 = vld [vmem:[#allocation3 + $0x50] sm:$0xff]
    %v49 = vld [vmem:[#allocation3 + $0x58] sm:$0xff]
    %v50 = vld [vmem:[#allocation3 + $0x60] sm:$0xff]
    %v51 = vld [vmem:[#allocation3 + $0x68] sm:$0xff]
    %v52 = vld [vmem:[#allocation3 + $0x70] sm:$0xff]
    %v53 = vld [vmem:[#allocation3 + $0x78] sm:$0xff]
    %v54 = vlog2.pop %v38
    %v55 = vmul.f32 %v54, 0.6931472
    %v56 = vlog2.pop %v39
    %v57 = vmul.f32 %v56, 0.6931472
    %v58 = vlog2.pop %v40
    %v59 = vmul.f32 %v58, 0.6931472
    %v60 = vlog2.pop %v41
    %v61 = vmul.f32 %v60, 0.6931472
    %v62 = vlog2.pop %v42
    %v63 = vmul.f32 %v62, 0.6931472
    %v64 = vlog2.pop %v43
    %v65 = vmul.f32 %v64, 0.6931472
    %v66 = vlog2.pop %v44
    %v67 = vmul.f32 %v66, 0.6931472
    %v68 = vlog2.pop %v45
    %v69 = vmul.f32 %v68, 0.6931472
    %v70 = vlog2.pop %v46
    %v71 = vmul.f32 %v70, 0.6931472
    %v72 = vlog2.pop %v47
    %v73 = vmul.f32 %v72, 0.6931472
    %v74 = vlog2.pop %v48
    %v75 = vmul.f32 %v74, 0.6931472
    %v76 = vlog2.pop %v49
    %v77 = vmul.f32 %v76, 0.6931472
    %v78 = vlog2.pop %v50
    %v79 = vmul.f32 %v78, 0.6931472
    %v80 = vlog2.pop %v51
    %v81 = vmul.f32 %v80, 0.6931472
    %v82 = vlog2.pop %v52
    %v83 = vmul.f32 %v82, 0.6931472
    %v84 = vlog2.pop %v53
    %v85 = vmul.f32 %v84, 0.6931472
    %v86 = vld [vmem:[#allocation2] sm:$0xff]
    %v87 = vld [vmem:[#allocation2 + $0x8] sm:$0xff]
    %v88 = vld [vmem:[#allocation2 + $0x10] sm:$0xff]
    %v89 = vld [vmem:[#allocation2 + $0x18] sm:$0xff]
    %v90 = vadd.f32 %v55, %v63
    %v91 = vadd.f32 %v90, %v71
    %v92 = vadd.f32 %v91, %v79
    %v93 = vadd.f32 %v57, %v65
    %v94 = vadd.f32 %v93, %v73
    %v95 = vadd.f32 %v94, %v81
    %v96 = vadd.f32 %v59, %v67
    %v97 = vadd.f32 %v96, %v75
    %v98 = vadd.f32 %v97, %v83
    %v99 = vadd.f32 %v61, %v69
    %v100 = vadd.f32 %v99, %v77
    %v101 = vadd.f32 %v100, %v85
    %v102 = vadd.f32 %v86, %v92
    %v103 = vadd.f32 %v87, %v95
    %v104 = vadd.f32 %v88, %v98
    %v105 = vadd.f32 %v89, %v101
    %106 = vst [vmem:[#allocation2] sm:$0xff] %v102
    %107 = vst [vmem:[#allocation2 + $0x8] sm:$0xff] %v103
    %108 = vst [vmem:[#allocation2 + $0x10] sm:$0xff] %v104
    %109 = vst [vmem:[#allocation2 + $0x18] sm:$0xff] %v105
    // Predicated region
    $region14: #{tpu_custom_call.1} parent=1 // pred_check
      %p110 = pneg %p30
    $region15: #{tpu_custom_call.1} parent=1 // pred_check_branch
      %112 = sbr.rel (%p110) target = $region17
    $region16: #{tpu_custom_call.1} parent=1 // pred_region
      %v113 = vld [vmem:[#allocation2] sm:$0xff]
      %v114 = vld [vmem:[#allocation2 + $0x8] sm:$0xff]
      %v115 = vld [vmem:[#allocation2 + $0x10] sm:$0xff]
      %v116 = vld [vmem:[#allocation2 + $0x18] sm:$0xff]
      %v117 = vadd.f32 %v113, %v114
      %v118 = vadd.f32 %v117, %v115
      %v119 = vadd.f32 %v118, %v116
      %120 = vadd.xlane.f32.xlu0 %v119
      %v121 = vpop.xlane.xlu0 %120
      %v122 = vrot.slane %v121, 4
      %v123 = vadd.f32 %v121, %v122
      %v124 = vrot.slane %v123, 2
      %v125 = vadd.f32 %v123, %v124
      %v126 = vrot.slane %v125, 1
      %v127 = vadd.f32 %v125, %v126
      %s128 = vtos %v127
      %s129 = scalar_lea.smem [#allocation6], 0
      %130 = sst [smem:[%s129]] %s128
    $region17: #{tpu_custom_call.1} parent=1 // pred_fallthru
      _
    // Predicated region
    $region18: #{tpu_custom_call.1} parent=1 // pred_check
      _
    $region19: #{tpu_custom_call.1} parent=1 // pred_check_branch
      %132 = sbr.rel (0) target = $region21
    $region20: #{tpu_custom_call.1} parent=1 // pred_region
      %s134 = ssub.s32 16, 16
      %135 = vsyncadd [#allocation5], %s134
      %138 = dma.smem_to_hbm [#allocation6], 16, %s1, [#allocation5]
    $region21: #{tpu_custom_call.1} parent=1 // pred_fallthru
      _
    // Predicated region
    $region22: #{tpu_custom_call.1} parent=1 // pred_check
      _
    $region23: #{tpu_custom_call.1} parent=1 // pred_check_branch
      %140 = sbr.rel (0) target = $region25
    $region24: #{tpu_custom_call.1} parent=1 // pred_region
      %141 = dma.done [#allocation5], 16
    $region25: #{tpu_custom_call.1} parent=1 // pred_fallthru
      _
    %142 = sfence
    %143 = vsyncpa [#allocation4], 1
    %144 = vsyncpa [#allocation5], 1

</llo_original>
